<compile_context>
chip_gen: v5e
topology: v5e:2x2
jax: 0.10.0
libtpu: 0.0.40
codegen_flags: <defaults>
</compile_context>

<pallas_src>
import jax
import jax.numpy as jnp
from jax.experimental import pallas as pl
from jax.experimental.pallas import tpu as pltpu


def strip_pool_kernel(x_ref, w12_ref, b12_ref, w3c_ref, b3h_ref,
                      pool_ref, mask_ref, bcast_ref, out_ref):
    f32 = jnp.float32
    w12 = w12_ref[...]        # (2*Cmid, Cin)   fused conv11_1 / conv11_2 (BN folded)
    b12 = b12_ref[...]        # (2*Cmid, 1)
    w3c = w3c_ref[...]        # (Cout, 2*Cmid)  = [w3 | w3]
    b3h = b3h_ref[...]        # (Cout, 1)       = b3 / 2
    pool = pool_ref[...]      # (HW, W+H)       = [ah | av]  (strip averaging)
    mask = mask_ref[...]      # (2*Cmid, W+H)   block-diagonal selector
    bcast = bcast_ref[...]    # (W+H, HW)       = [bh; bv]   (broadcast / upsample)

    tb = x_ref.shape[0]
    for b in range(tb):                                        # static unroll over batch tile
        x = x_ref[b]                                           # (Cin, HW) lane-dense
        # fused conv11_1 + conv11_2 (+BN) + ReLU: one (2Cmid, Cin) x (Cin, HW) matmul
        t12 = jnp.maximum(
            jnp.dot(w12, x, preferred_element_type=f32) + b12, 0.0)      # (2Cmid, HW)
        # fused h_pool / v_pool as one matmul; mask kills the cross blocks
        pooled = jnp.dot(t12, pool, preferred_element_type=f32) * mask   # (2Cmid, W+H)
        # conv11 (+BN) applied to the pooled strips (linear -> before broadcast),
        # b3/2 rides along so the broadcast matmul reconstitutes exactly b3
        strips = jnp.dot(w3c, pooled, preferred_element_type=f32) + b3h  # (Cout, W+H)
        # bilinear upsample from size-1 dims == broadcast (0/1 matmul), fused h+v
        fusion = jnp.dot(strips, bcast, preferred_element_type=f32)      # (Cout, HW)
        gate = jax.nn.sigmoid(jnp.maximum(fusion, 0.0))        # ReLU -> sigmoid (EUP)
        out_ref[b] = jnp.maximum(x * gate, 0.0)                # x.mul(gate), relu_


def strip_pool_pallas(x_nchw, p, eps=1e-5):
    B, Cin, H, W = x_nchw.shape
    Cmid = p['w1'].shape[0]
    Cout = p['w3'].shape[0]
    assert Cout == Cin, "x.mul(fusion) requires out_channel == in_channel"
    HW = H * W
    f32 = jnp.float32

    # ---- Fold eval-mode BatchNorm into the 1x1 conv weights / biases ----
    def fold(w, g, b, m, v):
        s = g / jnp.sqrt(v + eps)
        return (w * s[:, None]).astype(f32), ((b - m * s)[:, None]).astype(f32)

    w1f, b1f = fold(p['w1'], p['g1'], p['be1'], p['m1'], p['v1'])
    w2f, b2f = fold(p['w2'], p['g2'], p['be2'], p['m2'], p['v2'])
    w3f, b3f = fold(p['w3'], p['g3'], p['be3'], p['m3'], p['v3'])

    # Stacked conv weights (one matmul for conv11_1 + conv11_2; one for conv11)
    w12 = jnp.concatenate([w1f, w2f], axis=0)          # (2Cmid, Cin)
    b12 = jnp.concatenate([b1f, b2f], axis=0)          # (2Cmid, 1)
    w3c = jnp.concatenate([w3f, w3f], axis=1)          # (Cout, 2Cmid)
    b3h = 0.5 * b3f                                    # (Cout, 1)  (each output gets 2 * b3/2)

    # ---- Constant pooling / broadcast / selector matrices (row-major k = i*W + j) ----
    k = jnp.arange(HW)
    i_idx, j_idx = k // W, k % W
    ah = (j_idx[:, None] == jnp.arange(W)[None, :]).astype(f32) / H     # (HW, W)  mean over H
    av = (i_idx[:, None] == jnp.arange(H)[None, :]).astype(f32) / W     # (HW, H)  mean over W
    pool = jnp.concatenate([ah, av], axis=1)                            # (HW, W+H)
    bh = (jnp.arange(W)[:, None] == j_idx[None, :]).astype(f32)         # (W, HW)
    bv = (jnp.arange(H)[:, None] == i_idx[None, :]).astype(f32)         # (H, HW)
    bcast = jnp.concatenate([bh, bv], axis=0)                           # (W+H, HW)
    mask = jnp.concatenate(
        [jnp.concatenate([jnp.ones((Cmid, W), f32), jnp.zeros((Cmid, H), f32)], axis=1),
         jnp.concatenate([jnp.zeros((Cmid, W), f32), jnp.ones((Cmid, H), f32)], axis=1)],
        axis=0)                                                         # (2Cmid, W+H)

    # ---- Batch tiling: amortize per-step overhead, keep >= 2 steps for v7x ----
    bytes_per_image = 2 * Cin * HW * 4                       # in + out, f32
    max_tb_vmem = max(1, (8 << 20) // max(1, 2 * bytes_per_image))  # double-buffered, ~8 MiB budget
    num_steps = 2 if B >= 2 else 1
    TB = min(max(1, pl.cdiv(B, num_steps)), max_tb_vmem)
    num_steps = pl.cdiv(B, TB)
    B_pad = num_steps * TB

    x2 = x_nchw.reshape(B, Cin, HW).astype(f32)
    if B_pad != B:
        x2 = jnp.pad(x2, ((0, B_pad - B), (0, 0), (0, 0)))

    def fullspec(arr):
        nd = arr.ndim
        return pl.BlockSpec(arr.shape, lambda s, _nd=nd: (0,) * _nd)

    out2 = pl.pallas_call(
        strip_pool_kernel,
        out_shape=jax.ShapeDtypeStruct((B_pad, Cin, HW), f32),
        grid=(num_steps,),
        in_specs=[
            pl.BlockSpec((TB, Cin, HW), lambda s: (s, 0, 0)),   # x, lane-dense (Cin, HW)
            fullspec(w12), fullspec(b12), fullspec(w3c), fullspec(b3h),
            fullspec(pool), fullspec(mask), fullspec(bcast),
        ],
        out_specs=pl.BlockSpec((TB, Cin, HW), lambda s: (s, 0, 0)),
        compiler_params=pltpu.CompilerParams(dimension_semantics=("parallel",)),
    )(x2, w12, b12, w3c, b3h, pool, mask, bcast)

    return out2[:B].reshape(B, Cin, H, W)


# ---------------- pure-JAX reference (mirrors the PyTorch module, eval-mode BN) ----------------
def strip_pool_reference(x, p, eps=1e-5):
    hp = jax.lax.Precision.HIGHEST

    def conv1x1_bn_relu(inp, w, g, b, m, v):
        y = jnp.einsum('oc,bchw->bohw', w, inp, precision=hp)
        s = g / jnp.sqrt(v + eps)
        y = y * s[None, :, None, None] + (b - m * s)[None, :, None, None]
        return jnp.maximum(y, 0.0)

    hx = conv1x1_bn_relu(x, p['w1'], p['g1'], p['be1'], p['m1'], p['v1'])
    vx = conv1x1_bn_relu(x, p['w2'], p['g2'], p['be2'], p['m2'], p['v2'])
    hm = jnp.mean(hx, axis=2, keepdims=True)        # h_pool: (B, Cmid, 1, W)
    vm = jnp.mean(vx, axis=3, keepdims=True)        # v_pool: (B, Cmid, H, 1)
    # F.upsample_bilinear from a size-1 dim (align_corners=True) == broadcast
    fusion = jnp.broadcast_to(hm, hx.shape) + jnp.broadcast_to(vm, vx.shape)
    f = conv1x1_bn_relu(fusion, p['w3'], p['g3'], p['be3'], p['m3'], p['v3'])
    sig = jax.nn.sigmoid(f)
    return jnp.maximum(x * sig, 0.0)


if __name__ == "__main__":
    B, Cin, H, W = 2, 16, 16, 16            # in_channel = out_channel = 16, inter = 4
    Cout = Cin
    Cmid = Cin // 4
    key = jax.random.PRNGKey(0)
    ks = jax.random.split(key, 7)

    def bn_params(k, c):
        k1, k2, k3, k4 = jax.random.split(k, 4)
        return (1.0 + 0.1 * jax.random.normal(k1, (c,), jnp.float32),   # gamma
                0.1 * jax.random.normal(k2, (c,), jnp.float32),         # beta
                0.1 * jax.random.normal(k3, (c,), jnp.float32),         # running mean
                0.5 + jax.random.uniform(k4, (c,), jnp.float32))        # running var

    g1, be1, m1, v1 = bn_params(ks[1], Cmid)
    g2, be2, m2, v2 = bn_params(ks[3], Cmid)
    g3, be3, m3, v3 = bn_params(ks[5], Cout)
    params = {
        'w1': 0.3 * jax.random.normal(ks[0], (Cmid, Cin), jnp.float32),
        'g1': g1, 'be1': be1, 'm1': m1, 'v1': v1,
        'w2': 0.3 * jax.random.normal(ks[2], (Cmid, Cin), jnp.float32),
        'g2': g2, 'be2': be2, 'm2': m2, 'v2': v2,
        'w3': 0.3 * jax.random.normal(ks[4], (Cout, Cmid), jnp.float32),
        'g3': g3, 'be3': be3, 'm3': m3, 'v3': v3,
    }
    x = jax.random.normal(ks[6], (B, Cin, H, W), jnp.float32)

    out = jax.block_until_ready(strip_pool_pallas(x, params))
    ref = strip_pool_reference(x, params)
    err = float(jnp.max(jnp.abs(out - ref)))
    assert out.shape == (B, Cin, H, W)
    assert err < 2e-3, f"max abs err {err}"
    print("KERNEL_OK")
</pallas_src>

<mosaic_0001>
module attributes {stable_mosaic.version = 11 : i64} {
  func.func @strip_pool_kernel(%arg0: i32, %arg1: memref<1x16x256xf32, #tpu.memory_space<vmem>>, %arg2: memref<8x16xf32, #tpu.memory_space<vmem>>, %arg3: memref<8x1xf32, #tpu.memory_space<vmem>>, %arg4: memref<16x8xf32, #tpu.memory_space<vmem>>, %arg5: memref<16x1xf32, #tpu.memory_space<vmem>>, %arg6: memref<256x32xf32, #tpu.memory_space<vmem>>, %arg7: memref<8x32xf32, #tpu.memory_space<vmem>>, %arg8: memref<32x256xf32, #tpu.memory_space<vmem>>, %arg9: memref<1x16x256xf32, #tpu.memory_space<vmem>>) attributes {dimension_semantics = [#tpu.dimension_semantics<parallel>], iteration_bounds = array<i64: 2>, scalar_prefetch = 0 : i64, scratch_operands = 0 : i64, tpu.core_type = #tpu.core_type<tc>, window_params = [{transform_indices = @transform_0, window_bounds = array<i64: 1, 16, 256>}, {pipeline_mode = #tpu.pipeline_mode<synchronous>, transform_indices = @transform_1, window_bounds = array<i64: 8, 16>}, {pipeline_mode = #tpu.pipeline_mode<synchronous>, transform_indices = @transform_2, window_bounds = array<i64: 8, 1>}, {pipeline_mode = #tpu.pipeline_mode<synchronous>, transform_indices = @transform_3, window_bounds = array<i64: 16, 8>}, {pipeline_mode = #tpu.pipeline_mode<synchronous>, transform_indices = @transform_4, window_bounds = array<i64: 16, 1>}, {pipeline_mode = #tpu.pipeline_mode<synchronous>, transform_indices = @transform_5, window_bounds = array<i64: 256, 32>}, {pipeline_mode = #tpu.pipeline_mode<synchronous>, transform_indices = @transform_6, window_bounds = array<i64: 8, 32>}, {pipeline_mode = #tpu.pipeline_mode<synchronous>, transform_indices = @transform_7, window_bounds = array<i64: 32, 256>}, {transform_indices = @transform_8, window_bounds = array<i64: 1, 16, 256>}]} {
    %c0 = arith.constant 0 : index
    %c0_0 = arith.constant 0 : index
    %0 = vector.load %arg2[%c0, %c0_0] : memref<8x16xf32, #tpu.memory_space<vmem>>, vector<8x16xf32>
    %c0_1 = arith.constant 0 : index
    %c0_2 = arith.constant 0 : index
    %1 = vector.load %arg3[%c0_1, %c0_2] : memref<8x1xf32, #tpu.memory_space<vmem>>, vector<8x1xf32>
    %c0_3 = arith.constant 0 : index
    %c0_4 = arith.constant 0 : index
    %2 = vector.load %arg4[%c0_3, %c0_4] : memref<16x8xf32, #tpu.memory_space<vmem>>, vector<16x8xf32>
    %c0_5 = arith.constant 0 : index
    %c0_6 = arith.constant 0 : index
    %3 = vector.load %arg5[%c0_5, %c0_6] : memref<16x1xf32, #tpu.memory_space<vmem>>, vector<16x1xf32>
    %c0_7 = arith.constant 0 : index
    %c0_8 = arith.constant 0 : index
    %4 = vector.load %arg6[%c0_7, %c0_8] : memref<256x32xf32, #tpu.memory_space<vmem>>, vector<256x32xf32>
    %c0_9 = arith.constant 0 : index
    %c0_10 = arith.constant 0 : index
    %5 = vector.load %arg7[%c0_9, %c0_10] : memref<8x32xf32, #tpu.memory_space<vmem>>, vector<8x32xf32>
    %c0_11 = arith.constant 0 : index
    %c0_12 = arith.constant 0 : index
    %6 = vector.load %arg8[%c0_11, %c0_12] : memref<32x256xf32, #tpu.memory_space<vmem>>, vector<32x256xf32>
    %c0_13 = arith.constant 0 : index
    %c0_14 = arith.constant 0 : index
    %c0_15 = arith.constant 0 : index
    %7 = vector.load %arg1[%c0_13, %c0_14, %c0_15] : memref<1x16x256xf32, #tpu.memory_space<vmem>>, vector<1x16x256xf32>
    %8 = vector.shape_cast %7 : vector<1x16x256xf32> to vector<16x256xf32>
    %cst = arith.constant dense<0.000000e+00> : vector<8x256xf32>
    %9 = tpu.matmul %0, %8, %cst {dimension_numbers = #tpu.dot_dimension_numbers<[1], [0], [0], [1], [0, 0, 1, 1], [], []>} : vector<8x16xf32>, vector<16x256xf32>, vector<8x256xf32> -> vector<8x256xf32>
    %10 = vector.broadcast %1 : vector<8x1xf32> to vector<8x256xf32>
    %11 = arith.addf %9, %10 : vector<8x256xf32>
    %cst_16 = arith.constant 0.000000e+00 : f32
    %12 = vector.broadcast %cst_16 : f32 to vector<8x256xf32>
    %13 = arith.maximumf %11, %12 : vector<8x256xf32>
    %cst_17 = arith.constant dense<0.000000e+00> : vector<8x32xf32>
    %14 = tpu.matmul %13, %4, %cst_17 {dimension_numbers = #tpu.dot_dimension_numbers<[1], [0], [0], [1], [0, 0, 1, 1], [], []>} : vector<8x256xf32>, vector<256x32xf32>, vector<8x32xf32> -> vector<8x32xf32>
    %15 = arith.mulf %14, %5 : vector<8x32xf32>
    %cst_18 = arith.constant dense<0.000000e+00> : vector<16x32xf32>
    %16 = tpu.matmul %2, %15, %cst_18 {dimension_numbers = #tpu.dot_dimension_numbers<[1], [0], [0], [1], [0, 0, 1, 1], [], []>} : vector<16x8xf32>, vector<8x32xf32>, vector<16x32xf32> -> vector<16x32xf32>
    %17 = vector.broadcast %3 : vector<16x1xf32> to vector<16x32xf32>
    %18 = arith.addf %16, %17 : vector<16x32xf32>
    %cst_19 = arith.constant dense<0.000000e+00> : vector<16x256xf32>
    %19 = tpu.matmul %18, %6, %cst_19 {dimension_numbers = #tpu.dot_dimension_numbers<[1], [0], [0], [1], [0, 0, 1, 1], [], []>} : vector<16x32xf32>, vector<32x256xf32>, vector<16x256xf32> -> vector<16x256xf32>
    %cst_20 = arith.constant 0.000000e+00 : f32
    %20 = vector.broadcast %cst_20 : f32 to vector<16x256xf32>
    %21 = arith.maximumf %19, %20 : vector<16x256xf32>
    %22 = arith.negf %21 : vector<16x256xf32>
    %23 = math.exp %22 : vector<16x256xf32>
    %cst_21 = arith.constant 1.000000e+00 : f32
    %24 = vector.broadcast %cst_21 : f32 to vector<16x256xf32>
    %25 = arith.addf %24, %23 : vector<16x256xf32>
    %26 = arith.divf %24, %25 : vector<16x256xf32>
    %27 = arith.mulf %8, %26 : vector<16x256xf32>
    %cst_22 = arith.constant 0.000000e+00 : f32
    %28 = vector.broadcast %cst_22 : f32 to vector<16x256xf32>
    %29 = arith.maximumf %27, %28 : vector<16x256xf32>
    %c0_23 = arith.constant 0 : index
    %c0_24 = arith.constant 0 : index
    %c0_25 = arith.constant 0 : index
    %30 = vector.load %arg9[%c0_23, %c0_24, %c0_25] : memref<1x16x256xf32, #tpu.memory_space<vmem>>, vector<1x16x256xf32>
    %31 = vector.shape_cast %30 : vector<1x16x256xf32> to vector<16x256xf32>
    %32 = vector.shape_cast %29 : vector<16x256xf32> to vector<1x16x256xf32>
    tpu.vector_store %arg9[%c0_23, %c0_24, %c0_25], %32 {strides = array<i32>} : memref<1x16x256xf32, #tpu.memory_space<vmem>>, vector<1x16x256xf32>,
    return
  }
  func.func @transform_0(%arg0: i32) -> (i32, i32, i32) {
    %c0_i32 = arith.constant 0 : i32
    %c0_i32_0 = arith.constant 0 : i32
    %c0_i32_1 = arith.constant 0 : i32
    return %arg0, %c0_i32, %c0_i32_0 : i32, i32, i32
  }
  func.func @transform_1(%arg0: i32) -> (i32, i32) {
    %c0_i32 = arith.constant 0 : i32
    %c0_i32_0 = arith.constant 0 : i32
    %c0_i32_1 = arith.constant 0 : i32
    return %c0_i32, %c0_i32_0 : i32, i32
  }
  func.func @transform_2(%arg0: i32) -> (i32, i32) {
    %c0_i32 = arith.constant 0 : i32
    %c0_i32_0 = arith.constant 0 : i32
    %c0_i32_1 = arith.constant 0 : i32
    return %c0_i32, %c0_i32_0 : i32, i32
  }
  func.func @transform_3(%arg0: i32) -> (i32, i32) {
    %c0_i32 = arith.constant 0 : i32
    %c0_i32_0 = arith.constant 0 : i32
    %c0_i32_1 = arith.constant 0 : i32
    return %c0_i32, %c0_i32_0 : i32, i32
  }
  func.func @transform_4(%arg0: i32) -> (i32, i32) {
    %c0_i32 = arith.constant 0 : i32
    %c0_i32_0 = arith.constant 0 : i32
    %c0_i32_1 = arith.constant 0 : i32
    return %c0_i32, %c0_i32_0 : i32, i32
  }
  func.func @transform_5(%arg0: i32) -> (i32, i32) {
    %c0_i32 = arith.constant 0 : i32
    %c0_i32_0 = arith.constant 0 : i32
    %c0_i32_1 = arith.constant 0 : i32
    return %c0_i32, %c0_i32_0 : i32, i32
  }
  func.func @transform_6(%arg0: i32) -> (i32, i32) {
    %c0_i32 = arith.constant 0 : i32
    %c0_i32_0 = arith.constant 0 : i32
    %c0_i32_1 = arith.constant 0 : i32
    return %c0_i32, %c0_i32_0 : i32, i32
  }
  func.func @transform_7(%arg0: i32) -> (i32, i32) {
    %c0_i32 = arith.constant 0 : i32
    %c0_i32_0 = arith.constant 0 : i32
    %c0_i32_1 = arith.constant 0 : i32
    return %c0_i32, %c0_i32_0 : i32, i32
  }
  func.func @transform_8(%arg0: i32) -> (i32, i32, i32) {
    %c0_i32 = arith.constant 0 : i32
    %c0_i32_0 = arith.constant 0 : i32
    %c0_i32_1 = arith.constant 0 : i32
    return %arg0, %c0_i32, %c0_i32_0 : i32, i32, i32
  }
}

</mosaic_0001>

<llo_original>
// kernel: tpu_custom_call.1
$region0: #{tpu_custom_call.1}
  #allocation0 [shape = 'u32[]', space=smem, size = 0x4, offset = 0x4, fixed_abs, tag = 'smem constant byte address 0x4 - core index']
  #allocation1 [shape = 'u32[72,128]{1,0:T(1,128)}', space=vmem, size = 0x9000, scoped, tag = 'internal scratch']
  %s0 = inlined_call_operand.vmem [shape: f32[2,16,256], index: 0, kind: input, shape index: {}]
  %s1 = inlined_call_operand.vmem [shape: f32[8,16], index: 1, kind: input, shape index: {}]
  %s2 = inlined_call_operand.vmem [shape: f32[8,1], index: 2, kind: input, shape index: {}]
  %s3 = inlined_call_operand.vmem [shape: f32[16,8], index: 3, kind: input, shape index: {}]
  %s4 = inlined_call_operand.vmem [shape: f32[16,1], index: 4, kind: input, shape index: {}]
  %s5 = inlined_call_operand.vmem [shape: f32[256,32], index: 5, kind: input, shape index: {}]
  %s6 = inlined_call_operand.vmem [shape: f32[8,32], index: 6, kind: input, shape index: {}]
  %s7 = inlined_call_operand.vmem [shape: f32[32,256], index: 7, kind: input, shape index: {}]
  %s8 = inlined_call_operand.hbm [shape: f32[2,16,256], index: 8, kind: output, shape index: {}]
  %s9 = sld [smem:[#allocation0]]
  $region65: #{tpu_custom_call.1} parent=0
    _
  %s11 = ssub.s32 1, %s9
  %s12 = scalar_select 0, %s11, %s9
  $region1: #{tpu_custom_call.1} parent=0
    #allocation2 [shape = 'u8[32768]{0}', space=vmem, size = 0x8000, scoped, tag = 'output window, operand 0']
    #allocation3 [shape = 's32[2]{0}', space=sflag, size = 0x8, scoped, tag = 'scoped memory for tpu_custom_call.1']
    %13 = vsyncpa [#allocation3], 0
    %s14 = scalar_lea.sflag [#allocation3], 1
    %15 = vsyncpa %s14, 0
    loop: start=0, step=1, limit=4
    $region2: #{tpu_custom_call.1} parent=1 // loop_pre_header
      _
    $region3: #{tpu_custom_call.1} parent=1 // loop_header
      %s17 = sphi 0, %s21
      %p18 = scmp.ge.s32.totalorder %s17, 4
      %s27 = sphi 0, %s29
      %s30 = sphi 0, %s27
      %s31 = sphi 0, %s30
      %s47 = sphi 0, %s31
      %s51 = sphi 0, %s51
      %s53 = sphi 0, %s51
      %s54 = sphi 0, %s53
      %s68 = sphi 0, %s54
      %s72 = sphi 0, %s72
      %s74 = sphi 0, %s72
      %s75 = sphi 0, %s74
      %s89 = sphi 0, %s75
      %s93 = sphi 0, %s93
      %s95 = sphi 0, %s93
      %s96 = sphi 0, %s95
      %s110 = sphi 0, %s96
      %s114 = sphi 0, %s114
      %s116 = sphi 0, %s114
      %s117 = sphi 0, %s116
      %s131 = sphi 0, %s117
      %s135 = sphi 0, %s135
      %s137 = sphi 0, %s135
      %s138 = sphi 0, %s137
      %s152 = sphi 0, %s138
      %s156 = sphi 0, %s156
      %s158 = sphi 0, %s156
      %s159 = sphi 0, %s158
      %s173 = sphi 0, %s159
      %s177 = sphi 0, %s177
      %s179 = sphi 0, %s177
      %s180 = sphi 0, %s179
      %s194 = sphi 0, %s180
      %s200 = sphi 0, %s202
      %s203 = sphi 0, %s200
      %s204 = sphi 0, %s203
      %s220 = sphi 0, %s204
    $region4: #{tpu_custom_call.1} parent=1 // loop_header_branch
      %20 = sbr.rel (%p18) target = $region8
    $region5: #{tpu_custom_call.1} parent=1 // loop_body
      %s22 = ssub.s32 %s17, 1
      %s23 = ssub.s32 %s17, 2
      %s24 = sadd.s32 %s17, 1
      %s25 = ssub.s32 %s17, %s24
      %p26 = scmp.eq.s32.totalorder %s25, 0
      %s28 = sadd.s32 %s27, 1
      %s29 = scalar_select %p26, %s27, %s28
      %p32 = pneg %p26
      %p33 = scmp.eq.s32.totalorder %s17, 1
      %p34 = por %p32, %p33
      %p35 = scmp.ne.s32.totalorder %s27, %s30
      %p36 = scmp.eq.s32.totalorder %s17, 0
      %p37 = por %p35, %p36
      %p38 = scmp.ne.s32.totalorder %s27, %s30
      %p39 = scmp.eq.s32.totalorder %s22, 1
      %p40 = por %p38, %p39
      %p41 = scmp.ne.s32.totalorder %s30, %s31
      %p42 = scmp.eq.s32.totalorder %s22, 0
      %p43 = por %p41, %p42
      %p44 = scmp.ne.s32.totalorder %s30, %s31
      %p45 = scmp.eq.s32.totalorder %s23, 1
      %p46 = por %p44, %p45
      %p48 = scmp.ne.s32.totalorder %s31, %s47
      %p49 = scmp.eq.s32.totalorder %s23, 0
      %p50 = por %p48, %p49
      %s52 = sadd.s32 %s51, 1
      %p55 = scmp.eq.s32.totalorder %s17, 1
      %p56 = scmp.ne.s32.totalorder %s51, %s53
      %p57 = scmp.eq.s32.totalorder %s17, 0
      %p58 = por %p56, %p57
      %p59 = scmp.ne.s32.totalorder %s51, %s53
      %p60 = scmp.eq.s32.totalorder %s22, 1
      %p61 = por %p59, %p60
      %p62 = scmp.ne.s32.totalorder %s53, %s54
      %p63 = scmp.eq.s32.totalorder %s22, 0
      %p64 = por %p62, %p63
      %p65 = scmp.ne.s32.totalorder %s53, %s54
      %p66 = scmp.eq.s32.totalorder %s23, 1
      %p67 = por %p65, %p66
      %p69 = scmp.ne.s32.totalorder %s54, %s68
      %p70 = scmp.eq.s32.totalorder %s23, 0
      %p71 = por %p69, %p70
      %s73 = sadd.s32 %s72, 1
      %p76 = scmp.eq.s32.totalorder %s17, 1
      %p77 = scmp.ne.s32.totalorder %s72, %s74
      %p78 = scmp.eq.s32.totalorder %s17, 0
      %p79 = por %p77, %p78
      %p80 = scmp.ne.s32.totalorder %s72, %s74
      %p81 = scmp.eq.s32.totalorder %s22, 1
      %p82 = por %p80, %p81
      %p83 = scmp.ne.s32.totalorder %s74, %s75
      %p84 = scmp.eq.s32.totalorder %s22, 0
      %p85 = por %p83, %p84
      %p86 = scmp.ne.s32.totalorder %s74, %s75
      %p87 = scmp.eq.s32.totalorder %s23, 1
      %p88 = por %p86, %p87
      %p90 = scmp.ne.s32.totalorder %s75, %s89
      %p91 = scmp.eq.s32.totalorder %s23, 0
      %p92 = por %p90, %p91
      %s94 = sadd.s32 %s93, 1
      %p97 = scmp.eq.s32.totalorder %s17, 1
      %p98 = scmp.ne.s32.totalorder %s93, %s95
      %p99 = scmp.eq.s32.totalorder %s17, 0
      %p100 = por %p98, %p99
      %p101 = scmp.ne.s32.totalorder %s93, %s95
      %p102 = scmp.eq.s32.totalorder %s22, 1
      %p103 = por %p101, %p102
      %p104 = scmp.ne.s32.totalorder %s95, %s96
      %p105 = scmp.eq.s32.totalorder %s22, 0
      %p106 = por %p104, %p105
      %p107 = scmp.ne.s32.totalorder %s95, %s96
      %p108 = scmp.eq.s32.totalorder %s23, 1
      %p109 = por %p107, %p108
      %p111 = scmp.ne.s32.totalorder %s96, %s110
      %p112 = scmp.eq.s32.totalorder %s23, 0
      %p113 = por %p111, %p112
      %s115 = sadd.s32 %s114, 1
      %p118 = scmp.eq.s32.totalorder %s17, 1
      %p119 = scmp.ne.s32.totalorder %s114, %s116
      %p120 = scmp.eq.s32.totalorder %s17, 0
      %p121 = por %p119, %p120
      %p122 = scmp.ne.s32.totalorder %s114, %s116
      %p123 = scmp.eq.s32.totalorder %s22, 1
      %p124 = por %p122, %p123
      %p125 = scmp.ne.s32.totalorder %s116, %s117
      %p126 = scmp.eq.s32.totalorder %s22, 0
      %p127 = por %p125, %p126
      %p128 = scmp.ne.s32.totalorder %s116, %s117
      %p129 = scmp.eq.s32.totalorder %s23, 1
      %p130 = por %p128, %p129
      %p132 = scmp.ne.s32.totalorder %s117, %s131
      %p133 = scmp.eq.s32.totalorder %s23, 0
      %p134 = por %p132, %p133
      %s136 = sadd.s32 %s135, 1
      %p139 = scmp.eq.s32.totalorder %s17, 1
      %p140 = scmp.ne.s32.totalorder %s135, %s137
      %p141 = scmp.eq.s32.totalorder %s17, 0
      %p142 = por %p140, %p141
      %p143 = scmp.ne.s32.totalorder %s135, %s137
      %p144 = scmp.eq.s32.totalorder %s22, 1
      %p145 = por %p143, %p144
      %p146 = scmp.ne.s32.totalorder %s137, %s138
      %p147 = scmp.eq.s32.totalorder %s22, 0
      %p148 = por %p146, %p147
      %p149 = scmp.ne.s32.totalorder %s137, %s138
      %p150 = scmp.eq.s32.totalorder %s23, 1
      %p151 = por %p149, %p150
      %p153 = scmp.ne.s32.totalorder %s138, %s152
      %p154 = scmp.eq.s32.totalorder %s23, 0
      %p155 = por %p153, %p154
      %s157 = sadd.s32 %s156, 1
      %p160 = scmp.eq.s32.totalorder %s17, 1
      %p161 = scmp.ne.s32.totalorder %s156, %s158
      %p162 = scmp.eq.s32.totalorder %s17, 0
      %p163 = por %p161, %p162
      %p164 = scmp.ne.s32.totalorder %s156, %s158
      %p165 = scmp.eq.s32.totalorder %s22, 1
      %p166 = por %p164, %p165
      %p167 = scmp.ne.s32.totalorder %s158, %s159
      %p168 = scmp.eq.s32.totalorder %s22, 0
      %p169 = por %p167, %p168
      %p170 = scmp.ne.s32.totalorder %s158, %s159
      %p171 = scmp.eq.s32.totalorder %s23, 1
      %p172 = por %p170, %p171
      %p174 = scmp.ne.s32.totalorder %s159, %s173
      %p175 = scmp.eq.s32.totalorder %s23, 0
      %p176 = por %p174, %p175
      %s178 = sadd.s32 %s177, 1
      %p181 = scmp.eq.s32.totalorder %s17, 1
      %p182 = scmp.ne.s32.totalorder %s177, %s179
      %p183 = scmp.eq.s32.totalorder %s17, 0
      %p184 = por %p182, %p183
      %p185 = scmp.ne.s32.totalorder %s177, %s179
      %p186 = scmp.eq.s32.totalorder %s22, 1
      %p187 = por %p185, %p186
      %p188 = scmp.ne.s32.totalorder %s179, %s180
      %p189 = scmp.eq.s32.totalorder %s22, 0
      %p190 = por %p188, %p189
      %p191 = scmp.ne.s32.totalorder %s179, %s180
      %p192 = scmp.eq.s32.totalorder %s23, 1
      %p193 = por %p191, %p192
      %p195 = scmp.ne.s32.totalorder %s180, %s194
      %p196 = scmp.eq.s32.totalorder %s23, 0
      %p197 = por %p195, %p196
      %s198 = ssub.s32 %s17, %s24
      %p199 = scmp.eq.s32.totalorder %s198, 0
      %s201 = sadd.s32 %s200, 1
      %s202 = scalar_select %p199, %s200, %s201
      %p205 = pneg %p199
      %p206 = scmp.eq.s32.totalorder %s17, 1
      %p207 = por %p205, %p206
      %p208 = scmp.ne.s32.totalorder %s200, %s203
      %p209 = scmp.eq.s32.totalorder %s17, 0
      %p210 = por %p208, %p209
      %p211 = scmp.ne.s32.totalorder %s200, %s203
      %p212 = scmp.eq.s32.totalorder %s22, 1
      %p213 = por %p211, %p212
      %p214 = scmp.ne.s32.totalorder %s203, %s204
      %p215 = scmp.eq.s32.totalorder %s22, 0
      %p216 = por %p214, %p215
      %p217 = scmp.ne.s32.totalorder %s203, %s204
      %p218 = scmp.eq.s32.totalorder %s23, 1
      %p219 = por %p217, %p218
      %p221 = scmp.ne.s32.totalorder %s204, %s220
      %p222 = scmp.eq.s32.totalorder %s23, 0
      %p223 = por %p221, %p222
      %p224 = scmp.le.s32.totalorder 1, %s17
      %p225 = scmp.lt.s32.totalorder %s17, 3
      %p226 = pnand %p224, %p225
      %p227 = pneg %p226
      // Predicated region
      $region9: #{tpu_custom_call.1} parent=5 // pred_check
        _
      $region10: #{tpu_custom_call.1} parent=5 // pred_check_branch
        %229 = sbr.rel (%p226) target = $region12
      $region11: #{tpu_custom_call.1} parent=5 // pred_region
        %s230 = ssub.s32 %s17, 1
        // Predicated region
        $region13: #{tpu_custom_call.1} parent=11 // pred_check
          %p231 = pneg %p64
        $region14: #{tpu_custom_call.1} parent=11 // pred_check_branch
          %233 = sbr.rel (%p231) target = $region16
        $region15: #{tpu_custom_call.1} parent=11 // pred_region
          _
        $region16: #{tpu_custom_call.1} parent=11 // pred_fallthru
          _
        // Predicated region
        $region17: #{tpu_custom_call.1} parent=11 // pred_check
          %p234 = pneg %p85
        $region18: #{tpu_custom_call.1} parent=11 // pred_check_branch
          %236 = sbr.rel (%p234) target = $region20
        $region19: #{tpu_custom_call.1} parent=11 // pred_region
          _
        $region20: #{tpu_custom_call.1} parent=11 // pred_fallthru
          _
        // Predicated region
        $region21: #{tpu_custom_call.1} parent=11 // pred_check
          %p237 = pneg %p106
        $region22: #{tpu_custom_call.1} parent=11 // pred_check_branch
          %239 = sbr.rel (%p237) target = $region24
        $region23: #{tpu_custom_call.1} parent=11 // pred_region
          _
        $region24: #{tpu_custom_call.1} parent=11 // pred_fallthru
          _
        // Predicated region
        $region25: #{tpu_custom_call.1} parent=11 // pred_check
          %p240 = pneg %p127
        $region26: #{tpu_custom_call.1} parent=11 // pred_check_branch
          %242 = sbr.rel (%p240) target = $region28
        $region27: #{tpu_custom_call.1} parent=11 // pred_region
          _
        $region28: #{tpu_custom_call.1} parent=11 // pred_fallthru
          _
        // Predicated region
        $region29: #{tpu_custom_call.1} parent=11 // pred_check
          %p243 = pneg %p148
        $region30: #{tpu_custom_call.1} parent=11 // pred_check_branch
          %245 = sbr.rel (%p243) target = $region32
        $region31: #{tpu_custom_call.1} parent=11 // pred_region
          _
        $region32: #{tpu_custom_call.1} parent=11 // pred_fallthru
          _
        // Predicated region
        $region33: #{tpu_custom_call.1} parent=11 // pred_check
          %p246 = pneg %p169
        $region34: #{tpu_custom_call.1} parent=11 // pred_check_branch
          %248 = sbr.rel (%p246) target = $region36
        $region35: #{tpu_custom_call.1} parent=11 // pred_region
          _
        $region36: #{tpu_custom_call.1} parent=11 // pred_fallthru
          _
        // Predicated region
        $region37: #{tpu_custom_call.1} parent=11 // pred_check
          %p249 = pneg %p190
        $region38: #{tpu_custom_call.1} parent=11 // pred_check_branch
          %251 = sbr.rel (%p249) target = $region40
        $region39: #{tpu_custom_call.1} parent=11 // pred_region
          _
        $region40: #{tpu_custom_call.1} parent=11 // pred_fallthru
          _
      $region12: #{tpu_custom_call.1} parent=5 // pred_fallthru
        _
      %p252 = scmp.lt.s32.totalorder %s17, 2
      // Predicated region
      $region41: #{tpu_custom_call.1} parent=5 // pred_check
        %p253 = pneg %p252
      $region42: #{tpu_custom_call.1} parent=5 // pred_check_branch
        %255 = sbr.rel (%p253) target = $region44
      $region43: #{tpu_custom_call.1} parent=5 // pred_region
        // Predicated region
        $region45: #{tpu_custom_call.1} parent=43 // pred_check
          %p256 = pneg %p37
        $region46: #{tpu_custom_call.1} parent=43 // pred_check_branch
          %258 = sbr.rel (%p256) target = $region48
        $region47: #{tpu_custom_call.1} parent=43 // pred_region
          %p259 = scmp.lt.s32.totalorder %s17, 1
          %s260 = scalar_select %p259, %s17, 1
          %s261 = smul.addr %s260, 4
          %s262 = smul.addr %s261, 8
          %s263 = scalar_lea.vmem %s0, %s262
        $region48: #{tpu_custom_call.1} parent=43 // pred_fallthru
          _
      $region44: #{tpu_custom_call.1} parent=5 // pred_fallthru
        _
      %p264 = scmp.le.s32.totalorder 1, %s17
      %p265 = scmp.lt.s32.totalorder %s17, 3
      %p266 = pnand %p264, %p265
      %p267 = pneg %p266
      // Predicated region
      $region49: #{tpu_custom_call.1} parent=5 // pred_check
        _
      $region50: #{tpu_custom_call.1} parent=5 // pred_check_branch
        %269 = sbr.rel (%p266) target = $region52
      $region51: #{tpu_custom_call.1} parent=5 // pred_region
        %s270 = ssub.s32 %s17, 1
        %p271 = scmp.lt.s32.totalorder %s22, 1
        %s272 = scalar_select %p271, %s22, 1
        %s273 = smul.addr %s272, 4
        %s274 = smul.addr %s273, 8
        %s275 = scalar_lea.vmem %s0, %s274
        %p276 = pneg %p43
        %p277 = pneg %p40
        %p278 = pneg %p64
        %p279 = pneg %p61
        %p280 = pneg %p85
        %p281 = pneg %p82
        %p282 = pneg %p106
        %p283 = pneg %p103
        %p284 = pneg %p127
        %p285 = pneg %p124
        %p286 = pneg %p148
        %p287 = pneg %p145
        %p288 = pneg %p169
        %p289 = pneg %p166
        %p290 = pneg %p190
        %p291 = pneg %p187
        %p292 = pneg %p216
        %p293 = pneg %p213
        %s294 = sand.u32 %s203, 1
        %s295 = scalar_lea.sflag [#allocation3], %s294
        %s296 = sand.u32 %s203, 1
        %s297 = smul.addr %s296, 32
        %s298 = scalar_lea.vmem [#allocation2], %s297
        %p299 = scmp.lt.s32.totalorder %s22, 1
        %s300 = scalar_select %p299, %s22, 1
        %s301 = smul.addr %s300, 4
        %s302 = smul.addr %s301, 8
        %s303 = scalar_lea.vmem %s0, %s302
        %v304 = vld [vmem:[%s1] sm:$0xff]
        %v305 = vld [vmem:[%s2] sm:$0xff]
        %v306 = vld [vmem:[%s3] sm:$0xff]
        %v307 = vld [vmem:[%s3 + $0x8] sm:$0xff]
        %v308 = vld [vmem:[%s4] sm:$0xff]
        %v309 = vld [vmem:[%s4 + $0x8] sm:$0xff]
        %v310 = vld [vmem:[%s5] sm:$0xff]
        %v311 = vld [vmem:[%s5 + $0x8] sm:$0xff]
        %v312 = vld [vmem:[%s5 + $0x10] sm:$0xff]
        %v313 = vld [vmem:[%s5 + $0x18] sm:$0xff]
        %v314 = vld [vmem:[%s5 + $0x20] sm:$0xff]
        %v315 = vld [vmem:[%s5 + $0x28] sm:$0xff]
        %v316 = vld [vmem:[%s5 + $0x30] sm:$0xff]
        %v317 = vld [vmem:[%s5 + $0x38] sm:$0xff]
        %v318 = vld [vmem:[%s5 + $0x40] sm:$0xff]
        %v319 = vld [vmem:[%s5 + $0x48] sm:$0xff]
        %v320 = vld [vmem:[%s5 + $0x50] sm:$0xff]
        %v321 = vld [vmem:[%s5 + $0x58] sm:$0xff]
        %v322 = vld [vmem:[%s5 + $0x60] sm:$0xff]
        %v323 = vld [vmem:[%s5 + $0x68] sm:$0xff]
        %v324 = vld [vmem:[%s5 + $0x70] sm:$0xff]
        %v325 = vld [vmem:[%s5 + $0x78] sm:$0xff]
        %v326 = vld [vmem:[%s5 + $0x80] sm:$0xff]
        %v327 = vld [vmem:[%s5 + $0x88] sm:$0xff]
        %v328 = vld [vmem:[%s5 + $0x90] sm:$0xff]
        %v329 = vld [vmem:[%s5 + $0x98] sm:$0xff]
        %v330 = vld [vmem:[%s5 + $0xa0] sm:$0xff]
        %v331 = vld [vmem:[%s5 + $0xa8] sm:$0xff]
        %v332 = vld [vmem:[%s5 + $0xb0] sm:$0xff]
        %v333 = vld [vmem:[%s5 + $0xb8] sm:$0xff]
        %v334 = vld [vmem:[%s5 + $0xc0] sm:$0xff]
        %v335 = vld [vmem:[%s5 + $0xc8] sm:$0xff]
        %v336 = vld [vmem:[%s5 + $0xd0] sm:$0xff]
        %v337 = vld [vmem:[%s5 + $0xd8] sm:$0xff]
        %v338 = vld [vmem:[%s5 + $0xe0] sm:$0xff]
        %v339 = vld [vmem:[%s5 + $0xe8] sm:$0xff]
        %v340 = vld [vmem:[%s5 + $0xf0] sm:$0xff]
        %v341 = vld [vmem:[%s5 + $0xf8] sm:$0xff]
        %v342 = vld [vmem:[%s6] sm:$0xff]
        %v343 = vld [vmem:[%s7] sm:$0xff]
        %v344 = vld [vmem:[%s7 + $0x8] sm:$0xff]
        %v345 = vld [vmem:[%s7 + $0x10] sm:$0xff]
        %v346 = vld [vmem:[%s7 + $0x18] sm:$0xff]
        %v347 = vld [vmem:[%s7 + $0x20] sm:$0xff]
        %v348 = vld [vmem:[%s7 + $0x28] sm:$0xff]
        %v349 = vld [vmem:[%s7 + $0x30] sm:$0xff]
        %v350 = vld [vmem:[%s7 + $0x38] sm:$0xff]
        %v351 = vld [vmem:[%s303] sm:$0xff]
        %v352 = vld [vmem:[%s303 + $0x8] sm:$0xff]
        %v353 = vld [vmem:[%s303 + $0x10] sm:$0xff]
        %v354 = vld [vmem:[%s303 + $0x18] sm:$0xff]
        %356 = vset.pattern.permute.xlu0 0
        %357 = vperm.xlu0 %356, %v305
        %v358 = vpop.permute.xlu0 %357
        %vm360 = vcmask 130048
        %v362 = vsel %vm360, %v304, 0
        %364 = vmatpush.msra.mxu0 0.0
        %365 = vmatpush.msra.mxu0 0.0
        %366 = vmatpush.msra.mxu0 0.0
        %367 = vmatpush.msra.mxu0 0.0
        %368 = vmatpush.msra.mxu0 0.0
        %369 = vmatpush.msra.mxu0 0.0
        %370 = vmatpush.msra.mxu0 0.0
        %371 = vmatpush.msra.mxu0 0.0
        %372 = vmatpush.msra.mxu0 0.0
        %373 = vmatpush.msra.mxu0 0.0
        %374 = vmatpush.msra.mxu0 0.0
        %375 = vmatpush.msra.mxu0 0.0
        %376 = vmatpush.msra.mxu0 0.0
        %377 = vmatpush.msra.mxu0 0.0
        %378 = vmatpush.msra.mxu0 %v353
        %379 = vmatpush.msra.mxu0 %v351
        %380 = vmatmul.f32.gmra.mxu0 %v362
        %v381 = vpop.f32.mrf.mxu0
        %v382 = vadd.f32 %v358, %v381
        %383 = vdwg.mxu0
        %384 = vmatpush.msra.mxu0 0.0
        %385 = vmatpush.msra.mxu0 0.0
        %386 = vmatpush.msra.mxu0 0.0
        %387 = vmatpush.msra.mxu0 0.0
        %388 = vmatpush.msra.mxu0 0.0
        %389 = vmatpush.msra.mxu0 0.0
        %390 = vmatpush.msra.mxu0 0.0
        %391 = vmatpush.msra.mxu0 0.0
        %392 = vmatpush.msra.mxu0 0.0
        %393 = vmatpush.msra.mxu0 0.0
        %394 = vmatpush.msra.mxu0 0.0
        %395 = vmatpush.msra.mxu0 0.0
        %396 = vmatpush.msra.mxu0 0.0
        %397 = vmatpush.msra.mxu0 0.0
        %398 = vmatpush.msra.mxu0 %v354
        %399 = vmatpush.msra.mxu0 %v352
        %400 = vmatmul.f32.gmra.mxu0 %v362
        %v401 = vpop.f32.mrf.mxu0
        %v402 = vadd.f32 %v358, %v401
        %403 = vdwg.mxu0
        %v404 = vmax.f32 %v382, 0.0
        %v405 = vmax.f32 %v402, 0.0
        %406 = vmatpush.msra.mxu0 %v325
        %407 = vmatpush.msra.mxu0 %v324
        %408 = vmatpush.msra.mxu0 %v323
        %409 = vmatpush.msra.mxu0 %v322
        %410 = vmatpush.msra.mxu0 %v321
        %411 = vmatpush.msra.mxu0 %v320
        %412 = vmatpush.msra.mxu0 %v319
        %413 = vmatpush.msra.mxu0 %v318
        %414 = vmatpush.msra.mxu0 %v317
        %415 = vmatpush.msra.mxu0 %v316
        %416 = vmatpush.msra.mxu0 %v315
        %417 = vmatpush.msra.mxu0 %v314
        %418 = vmatpush.msra.mxu0 %v313
        %419 = vmatpush.msra.mxu0 %v312
        %420 = vmatpush.msra.mxu0 %v311
        %421 = vmatpush.msra.mxu0 %v310
        %422 = vmatmul.f32.gmra.mxu0 %v404
        %v423 = vpop.f32.mrf.mxu0
        %v424 = vadd.f32 0.0, %v423
        %425 = vdwg.mxu0
        %426 = vmatpush.msra.mxu0 %v341
        %427 = vmatpush.msra.mxu0 %v340
        %428 = vmatpush.msra.mxu0 %v339
        %429 = vmatpush.msra.mxu0 %v338
        %430 = vmatpush.msra.mxu0 %v337
        %431 = vmatpush.msra.mxu0 %v336
        %432 = vmatpush.msra.mxu0 %v335
        %433 = vmatpush.msra.mxu0 %v334
        %434 = vmatpush.msra.mxu0 %v333
        %435 = vmatpush.msra.mxu0 %v332
        %436 = vmatpush.msra.mxu0 %v331
        %437 = vmatpush.msra.mxu0 %v330
        %438 = vmatpush.msra.mxu0 %v329
        %439 = vmatpush.msra.mxu0 %v328
        %440 = vmatpush.msra.mxu0 %v327
        %441 = vmatpush.msra.mxu0 %v326
        %442 = vmatmul.f32.gmra.mxu0 %v405
        %v443 = vpop.f32.mrf.mxu0
        %v444 = vadd.f32 %v424, %v443
        %445 = vdwg.mxu0
        %v446 = vmul.f32 %v444, %v342
        %448 = vset.pattern.permute.xlu0 0
        %449 = vperm.xlu0 %448, %v308
        %v450 = vpop.permute.xlu0 %449
        %453 = vset.pattern.permute.xlu0 0
        %454 = vperm.xlu0 %453, %v309
        %v455 = vpop.permute.xlu0 %454
        %vm457 = vcmask 64512
        %v459 = vsel %vm457, %v306, 0
        %v462 = vsel %vm457, %v307, 0
        %464 = vmatpush.msra.mxu0 0.0
        %465 = vmatpush.msra.mxu0 0.0
        %466 = vmatpush.msra.mxu0 0.0
        %467 = vmatpush.msra.mxu0 0.0
        %468 = vmatpush.msra.mxu0 0.0
        %469 = vmatpush.msra.mxu0 0.0
        %470 = vmatpush.msra.mxu0 0.0
        %471 = vmatpush.msra.mxu0 0.0
        %472 = vmatpush.msra.mxu0 0.0
        %473 = vmatpush.msra.mxu0 0.0
        %474 = vmatpush.msra.mxu0 0.0
        %475 = vmatpush.msra.mxu0 0.0
        %476 = vmatpush.msra.mxu0 0.0
        %477 = vmatpush.msra.mxu0 0.0
        %478 = vmatpush.msra.mxu0 0.0
        %479 = vmatpush.msra.mxu0 %v446
        %480 = vmatmul.f32.gmra.mxu0 %v459
        %v481 = vpop.f32.mrf.mxu0
        %v482 = vadd.f32 %v450, %v481
        %483 = vmatmul.f32.gmra.mxu0 %v462
        %v484 = vpop.f32.mrf.mxu0
        %v485 = vadd.f32 %v455, %v484
        %486 = vdwg.mxu0
        %vm487 = vcmask 261120
        %v489 = vsel %vm487, %v482, 0
        %v492 = vsel %vm487, %v485, 0
        %494 = vmatpush.msra.mxu0 0.0
        %495 = vmatpush.msra.mxu0 0.0
        %496 = vmatpush.msra.mxu0 0.0
        %497 = vmatpush.msra.mxu0 0.0
        %498 = vmatpush.msra.mxu0 0.0
        %499 = vmatpush.msra.mxu0 0.0
        %500 = vmatpush.msra.mxu0 0.0
        %501 = vmatpush.msra.mxu0 0.0
        %502 = vmatpush.msra.mxu0 0.0
        %503 = vmatpush.msra.mxu0 0.0
        %504 = vmatpush.msra.mxu0 0.0
        %505 = vmatpush.msra.mxu0 0.0
        %506 = vmatpush.msra.mxu0 %v349
        %507 = vmatpush.msra.mxu0 %v347
        %508 = vmatpush.msra.mxu0 %v345
        %509 = vmatpush.msra.mxu0 %v343
        %510 = vmatmul.f32.gmra.mxu0 %v489
        %v511 = vpop.f32.mrf.mxu0
        %v512 = vadd.f32 0.0, %v511
        %513 = vmatmul.f32.gmra.mxu0 %v492
        %v514 = vpop.f32.mrf.mxu0
        %v515 = vadd.f32 0.0, %v514
        %516 = vdwg.mxu0
        %517 = vmatpush.msra.mxu0 0.0
        %518 = vmatpush.msra.mxu0 0.0
        %519 = vmatpush.msra.mxu0 0.0
        %520 = vmatpush.msra.mxu0 0.0
        %521 = vmatpush.msra.mxu0 0.0
        %522 = vmatpush.msra.mxu0 0.0
        %523 = vmatpush.msra.mxu0 0.0
        %524 = vmatpush.msra.mxu0 0.0
        %525 = vmatpush.msra.mxu0 0.0
        %526 = vmatpush.msra.mxu0 0.0
        %527 = vmatpush.msra.mxu0 0.0
        %528 = vmatpush.msra.mxu0 0.0
        %529 = vmatpush.msra.mxu0 %v350
        %530 = vmatpush.msra.mxu0 %v348
        %531 = vmatpush.msra.mxu0 %v346
        %532 = vmatpush.msra.mxu0 %v344
        %533 = vmatmul.f32.gmra.mxu0 %v489
        %v534 = vpop.f32.mrf.mxu0
        %v535 = vadd.f32 0.0, %v534
        %536 = vmatmul.f32.gmra.mxu0 %v492
        %v537 = vpop.f32.mrf.mxu0
        %v538 = vadd.f32 0.0, %v537
        %539 = vdwg.mxu0
        %v540 = vmax.f32 %v512, 0.0
        %v541 = vmax.f32 %v535, 0.0
        %v542 = vmax.f32 %v515, 0.0
        %v543 = vmax.f32 %v538, 0.0
        %v544 = vxor.u32 %v540, 2147483648
        %v545 = vxor.u32 %v541, 2147483648
        %v546 = vxor.u32 %v542, 2147483648
        %v547 = vxor.u32 %v543, 2147483648
        %v548 = vmul.f32 %v544, 1.442695
        %v549 = vpow.pop %v548
        %v550 = vmul.f32 %v545, 1.442695
        %v551 = vpow.pop %v550
        %v552 = vmul.f32 %v546, 1.442695
        %v553 = vpow.pop %v552
        %v554 = vmul.f32 %v547, 1.442695
        %v555 = vpow.pop %v554
        %v556 = vadd.f32 %v549, 1.0
        %v557 = vadd.f32 %v551, 1.0
        %v558 = vadd.f32 %v553, 1.0
        %v559 = vadd.f32 %v555, 1.0
        %v560 = vrcp.pop %v556
        %v561 = vmul.f32 %v556, %v560
        %v562 = vsub.f32 1.0, %v561
        %v563 = vmul.f32 %v560, %v562
        %v564 = vadd.f32 %v560, %v563
        %vm565 = vweird.f32 %v556
        %vm566 = vweird.f32 %v560
        %vm567 = vmor %vm565, %vm566
        %v568 = vsel %vm567, %v560, %v564
        %v569 = vand.u32 2147483647, %v556
        %vm570 = vcmp.eq.f32.partialorder %v569, 8.507059e+37
        %v571 = vand.u32 %v556, 2147483648
        %v572 = vor.u32 1.1754944e-38, %v571
        %v573 = vsel %vm570, %v572, %v568
        %v574 = vmul.f32 1.0, %v573
        %v575 = vrcp.pop %v557
        %v576 = vmul.f32 %v557, %v575
        %v577 = vsub.f32 1.0, %v576
        %v578 = vmul.f32 %v575, %v577
        %v579 = vadd.f32 %v575, %v578
        %vm580 = vweird.f32 %v557
        %vm581 = vweird.f32 %v575
        %vm582 = vmor %vm580, %vm581
        %v583 = vsel %vm582, %v575, %v579
        %v584 = vand.u32 2147483647, %v557
        %vm585 = vcmp.eq.f32.partialorder %v584, 8.507059e+37
        %v586 = vand.u32 %v557, 2147483648
        %v587 = vor.u32 1.1754944e-38, %v586
        %v588 = vsel %vm585, %v587, %v583
        %v589 = vmul.f32 1.0, %v588
        %v590 = vrcp.pop %v558
        %v591 = vmul.f32 %v558, %v590
        %v592 = vsub.f32 1.0, %v591
        %v593 = vmul.f32 %v590, %v592
        %v594 = vadd.f32 %v590, %v593
        %vm595 = vweird.f32 %v558
        %vm596 = vweird.f32 %v590
        %vm597 = vmor %vm595, %vm596
        %v598 = vsel %vm597, %v590, %v594
        %v599 = vand.u32 2147483647, %v558
        %vm600 = vcmp.eq.f32.partialorder %v599, 8.507059e+37
        %v601 = vand.u32 %v558, 2147483648
        %v602 = vor.u32 1.1754944e-38, %v601
        %v603 = vsel %vm600, %v602, %v598
        %v604 = vmul.f32 1.0, %v603
        %v605 = vrcp.pop %v559
        %v606 = vmul.f32 %v559, %v605
        %v607 = vsub.f32 1.0, %v606
        %v608 = vmul.f32 %v605, %v607
        %v609 = vadd.f32 %v605, %v608
        %vm610 = vweird.f32 %v559
        %vm611 = vweird.f32 %v605
        %vm612 = vmor %vm610, %vm611
        %v613 = vsel %vm612, %v605, %v609
        %v614 = vand.u32 2147483647, %v559
        %vm615 = vcmp.eq.f32.partialorder %v614, 8.507059e+37
        %v616 = vand.u32 %v559, 2147483648
        %v617 = vor.u32 1.1754944e-38, %v616
        %v618 = vsel %vm615, %v617, %v613
        %v619 = vmul.f32 1.0, %v618
        %v620 = vmul.f32 %v351, %v574
        %v621 = vmul.f32 %v352, %v589
        %v622 = vmul.f32 %v353, %v604
        %v623 = vmul.f32 %v354, %v619
        %v624 = vmax.f32 %v620, 0.0
        %v625 = vmax.f32 %v621, 0.0
        %v626 = vmax.f32 %v622, 0.0
        %v627 = vmax.f32 %v623, 0.0
        %628 = vst [vmem:[%s298] sm:$0xff] %v624
        %629 = vst [vmem:[%s298 + $0x8] sm:$0xff] %v625
        %630 = vst [vmem:[%s298 + $0x10] sm:$0xff] %v626
        %631 = vst [vmem:[%s298 + $0x18] sm:$0xff] %v627
        %s632 = sand.u32 %s203, 1
        %s633 = scalar_lea.sflag [#allocation3], %s632
        %s634 = sand.u32 %s203, 1
        %s635 = smul.addr %s634, 32
        %s636 = scalar_lea.vmem [#allocation2], %s635
        // Predicated region
        $region53: #{tpu_custom_call.1} parent=51 // pred_check
          %p637 = pneg %p213
        $region54: #{tpu_custom_call.1} parent=51 // pred_check_branch
          %639 = sbr.rel (%p637) target = $region56
        $region55: #{tpu_custom_call.1} parent=51 // pred_region
          %641 = vsyncadd %s633, 0
          %s642 = smul.addr %s22, 4
          %s643 = smul.addr %s642, 8
          %s644 = scalar_lea.hbm %s8, %s643
          %s645 = sshll.u32 %s636, 4
          %s646 = int_to_ptr.vmem [resolvable:$true] %s645
          %s647 = sshll.u32 %s644, 4
          %s648 = int_to_ptr.hbm [resolvable:$true] %s647
          %653 = dma.vmem_to_hbm [thread:$0]  %s646, 512, %s648, %s633, 256, 256, 16
        $region56: #{tpu_custom_call.1} parent=51 // pred_fallthru
          _
      $region52: #{tpu_custom_call.1} parent=5 // pred_fallthru
        _
      %p654 = scmp.le.s32.totalorder 2, %s17
      // Predicated region
      $region57: #{tpu_custom_call.1} parent=5 // pred_check
        %p655 = pneg %p654
      $region58: #{tpu_custom_call.1} parent=5 // pred_check_branch
        %657 = sbr.rel (%p655) target = $region60
      $region59: #{tpu_custom_call.1} parent=5 // pred_region
        %s658 = ssub.s32 %s17, 2
        // Predicated region
        $region61: #{tpu_custom_call.1} parent=59 // pred_check
          %p659 = pneg %p219
        $region62: #{tpu_custom_call.1} parent=59 // pred_check_branch
          %661 = sbr.rel (%p659) target = $region64
        $region63: #{tpu_custom_call.1} parent=59 // pred_region
          %s662 = sand.u32 %s204, 1
          %s663 = scalar_lea.sflag [#allocation3], %s662
          %s664 = sand.u32 %s204, 1
          %s665 = smul.addr %s664, 32
          %s666 = scalar_lea.vmem [#allocation2], %s665
          %668 = dma.done %s663, 512
        $region64: #{tpu_custom_call.1} parent=59 // pred_fallthru
          _
      $region60: #{tpu_custom_call.1} parent=5 // pred_fallthru
        _
    $region6: #{tpu_custom_call.1} parent=1 // loop_footer
      %s21 = sadd.s32 1, %s17
    $region7: #{tpu_custom_call.1} parent=1 // loop_footer_branch
      %16 = sbr.rel target = $region3
    $region8: #{tpu_custom_call.1} parent=1 // loop_exit
      _
    %669 = vsyncpa [#allocation3], 1
    %s670 = scalar_lea.sflag [#allocation3], 1
    %671 = vsyncpa %s670, 1

</llo_original>
